<compile_context>
chip_gen: v5e
topology: v5e:2x2
jax: 0.10.0
libtpu: 0.0.40
codegen_flags: <defaults>
</compile_context>

<pallas_src>
import jax
import jax.numpy as jnp
from jax.experimental import pallas as pl
from jax.experimental.pallas import tpu as pltpu

_LANE = 128                                   # lane-dense last dim -> unmasked stores
_ROW_BYTES = _LANE * 4                        # f32 rows
_MAX_TILE_BYTES = 16 * 1024 * 1024            # 16 MiB tiles (32 MiB double-buffered)
_MAX_TILE_ROWS = _MAX_TILE_BYTES // _ROW_BYTES  # 32768 rows


def _uniform_rand_kernel(seed_ref, out_ref):
    tile_rows, lane = out_ref.shape

    # ---- scalar-unit work (free slots): fold seed + grid step into one key ----
    tid = pl.program_id(0).astype(jnp.uint32)
    seed = seed_ref[0].astype(jnp.uint32)
    key = seed * jnp.uint32(0x9E3779B9) + tid * jnp.uint32(0x85EBCA6B)
    key = (key ^ (key >> jnp.uint32(16))) * jnp.uint32(0xC2B2AE35)

    # ---- per-element VPU work (~14 ops/element) ----
    # Tile-local flat index: row << 7 | col (unique within the tile).
    r = jax.lax.broadcasted_iota(jnp.int32, (tile_rows, lane), 0)
    c = jax.lax.broadcasted_iota(jnp.int32, (tile_rows, lane), 1)
    x = ((r << 7) | c).astype(jnp.uint32) ^ key

    # lowbias32-style finalizer (trailing xor-shift dropped: it only improves
    # low bits, which end up in the low mantissa / discarded bits).
    x = (x ^ (x >> jnp.uint32(16))) * jnp.uint32(0x7FEB352D)
    x = (x ^ (x >> jnp.uint32(15))) * jnp.uint32(0x846CA68B)

    # Exponent trick: top 23 bits -> f32 in [1, 2), minus 1 -> [0, 1).
    bits = (x >> jnp.uint32(9)) | jnp.uint32(0x3F800000)
    out_ref[...] = pltpu.bitcast(bits, jnp.float32) - jnp.float32(1.0)


def dummy_model_forward(x, *, B, D, H, W, seed=0):
    """Pallas equivalent of DummyModel.forward: ignores `x`, returns a uniform
    [0, 1) random float32 tensor of shape (B, D, H, W)."""
    del x  # the PyTorch module never reads its input
    n = B * D * H * W
    rows = pl.cdiv(n, _LANE)

    # >= 2 grid steps for anything over ~1 MiB so both v7x TensorCores get work
    # (no effect on v5e/v6e); otherwise as few, as large tiles as possible.
    min_tiles = 2 if rows * _ROW_BYTES > (1 << 20) else 1
    num_tiles = max(min_tiles, pl.cdiv(rows, _MAX_TILE_ROWS))
    tile_rows = pl.cdiv(rows, num_tiles)
    if num_tiles > 1:
        tile_rows = ((tile_rows + 7) // 8) * 8      # keep (8,128)-aligned blocks
    grid_rows = pl.cdiv(rows, tile_rows)            # ragged last tile is clipped by Pallas

    tile_bytes = tile_rows * _ROW_BYTES
    vmem_limit = min(48 << 20, max(16 << 20, 2 * tile_bytes + (4 << 20)))

    seed_arr = jnp.array([seed], dtype=jnp.int32)

    flat = pl.pallas_call(
        _uniform_rand_kernel,
        out_shape=jax.ShapeDtypeStruct((rows, _LANE), jnp.float32),
        grid_spec=pltpu.PrefetchScalarGridSpec(
            num_scalar_prefetch=1,                  # seed lands in SMEM
            grid=(grid_rows,),
            in_specs=[],
            out_specs=pl.BlockSpec((tile_rows, _LANE), lambda i, seed_ref: (i, 0)),
        ),
        compiler_params=pltpu.CompilerParams(
            dimension_semantics=("parallel",),      # megacore-shardable on v7x
            vmem_limit_bytes=vmem_limit,
        ),
    )(seed_arr)

    if n % _LANE == 0:
        # Contiguous reshape, no slice, no copy -- the common case.
        return flat.reshape(B, D, H, W)
    # Ragged element count: the last 128-lane row has padding that must be trimmed.
    return flat.reshape(-1)[:n].reshape(B, D, H, W)


if __name__ == "__main__":
    # Small shapes consistent with the module's constructor args.
    B, D, H, W = 2, 4, 16, 16

    key = jax.random.PRNGKey(0)
    # Example input (ignored by the forward pass, exactly like the PyTorch module).
    x = jax.random.normal(key, (B, D, H, W), dtype=jnp.float32)

    out = dummy_model_forward(x, B=B, D=D, H=H, W=W, seed=0)
    out = jax.block_until_ready(out)

    assert out.shape == (B, D, H, W), out.shape
    assert out.dtype == jnp.float32, out.dtype
    # Uniform [0, 1) sanity checks.
    assert bool(jnp.all(out >= 0.0)) and bool(jnp.all(out < 1.0))
    mean = float(jnp.mean(out))
    assert 0.4 < mean < 0.6, mean
    assert float(jnp.max(out)) > float(jnp.min(out))  # not degenerate

    print("KERNEL_OK")
</pallas_src>

<mosaic_0001>
module attributes {stable_mosaic.version = 11 : i64} {
  func.func @_uniform_rand_kernel(%arg0: i32, %arg1: memref<1xi32, #tpu.memory_space<smem>>, %arg2: memref<16x128xf32, #tpu.memory_space<vmem>>) attributes {dimension_semantics = [#tpu.dimension_semantics<parallel>], iteration_bounds = array<i64: 1>, scalar_prefetch = 1 : i64, scratch_operands = 0 : i64, tpu.core_type = #tpu.core_type<tc>, window_params = [{transform_indices = @transform_0, window_bounds = array<i64: 16, 128>}]} {
    %c0 = arith.constant 0 : index
    %0 = memref.load %arg1[%c0] : memref<1xi32, #tpu.memory_space<smem>>
    %c-1640531527_i32 = arith.constant -1640531527 : i32
    %1 = arith.muli %0, %c-1640531527_i32 : i32
    %c-2048144789_i32 = arith.constant -2048144789 : i32
    %2 = arith.muli %arg0, %c-2048144789_i32 : i32
    %3 = arith.addi %1, %2 : i32
    %c16_i32 = arith.constant 16 : i32
    %4 = arith.shrui %3, %c16_i32 : i32
    %5 = arith.xori %3, %4 : i32
    %c-1028477387_i32 = arith.constant -1028477387 : i32
    %6 = arith.muli %5, %c-1028477387_i32 : i32
    %7 = tpu.iota {dimensions = array<i32: 0>} : vector<16x128xi32>
    %8 = tpu.iota {dimensions = array<i32: 1>} : vector<16x128xi32>
    %c7_i32 = arith.constant 7 : i32
    %9 = vector.broadcast %c7_i32 : i32 to vector<16x128xi32>
    %10 = arith.shli %7, %9 : vector<16x128xi32>
    %11 = arith.ori %10, %8 : vector<16x128xi32>
    %12 = vector.broadcast %6 : i32 to vector<16x128xi32>
    %13 = arith.xori %11, %12 : vector<16x128xi32>
    %c16_i32_0 = arith.constant 16 : i32
    %14 = vector.broadcast %c16_i32_0 : i32 to vector<16x128xi32>
    %15 = arith.shrui %13, %14 : vector<16x128xi32>
    %16 = arith.xori %13, %15 : vector<16x128xi32>
    %c2146121005_i32 = arith.constant 2146121005 : i32
    %17 = vector.broadcast %c2146121005_i32 : i32 to vector<16x128xi32>
    %18 = arith.muli %16, %17 : vector<16x128xi32>
    %c15_i32 = arith.constant 15 : i32
    %19 = vector.broadcast %c15_i32 : i32 to vector<16x128xi32>
    %20 = arith.shrui %18, %19 : vector<16x128xi32>
    %21 = arith.xori %18, %20 : vector<16x128xi32>
    %c-2073254261_i32 = arith.constant -2073254261 : i32
    %22 = vector.broadcast %c-2073254261_i32 : i32 to vector<16x128xi32>
    %23 = arith.muli %21, %22 : vector<16x128xi32>
    %c9_i32 = arith.constant 9 : i32
    %24 = vector.broadcast %c9_i32 : i32 to vector<16x128xi32>
    %25 = arith.shrui %23, %24 : vector<16x128xi32>
    %c1065353216_i32 = arith.constant 1065353216 : i32
    %26 = vector.broadcast %c1065353216_i32 : i32 to vector<16x128xi32>
    %27 = arith.ori %25, %26 : vector<16x128xi32>
    %28 = tpu.bitcast %27 : vector<16x128xi32> -> vector<16x128xf32>
    %cst = arith.constant 1.000000e+00 : f32
    %29 = vector.broadcast %cst : f32 to vector<16x128xf32>
    %30 = arith.subf %28, %29 : vector<16x128xf32>
    %c0_1 = arith.constant 0 : index
    %c0_2 = arith.constant 0 : index
    %31 = vector.load %arg2[%c0_1, %c0_2] : memref<16x128xf32, #tpu.memory_space<vmem>>, vector<16x128xf32>
    tpu.vector_store %arg2[%c0_1, %c0_2], %30 {strides = array<i32>} : memref<16x128xf32, #tpu.memory_space<vmem>>, vector<16x128xf32>,
    return
  }
  func.func @transform_0(%arg0: i32, %arg1: memref<1xi32, #tpu.memory_space<smem>>) -> (i32, i32) {
    %c0_i32 = arith.constant 0 : i32
    %c0_i32_0 = arith.constant 0 : i32
    return %arg0, %c0_i32 : i32, i32
  }
}

</mosaic_0001>

<llo_original>
// kernel: tpu_custom_call.1
$region0: #{tpu_custom_call.1}
  #allocation0 [shape = 'u32[]', space=smem, size = 0x4, offset = 0x4, fixed_abs, tag = 'smem constant byte address 0x4 - core index']
  #allocation1 [shape = 'u32[72,128]{1,0:T(1,128)}', space=vmem, size = 0x9000, scoped, tag = 'internal scratch']
  #allocation2 [shape = 's32[1]{0}', space=sflag, size = 0x4, scoped, tag = 'scoped memory for tpu_custom_call.1']
  #allocation3 [shape = 's32[1]{0:T(128)S(6)}', space=smem, size = 0x200, scoped, tag = 'prefetched SMEM operand 0']
  %s0 = inlined_call_operand.<no memory space> [shape: s32[1], index: 0, kind: input, shape index: {}]
  %s1 = inlined_call_operand.hbm [shape: f32[16,128], index: 1, kind: output, shape index: {}]
  %s2 = sld [smem:[#allocation0]]
  $region10: #{tpu_custom_call.1} parent=0
    _
  %s4 = ssub.s32 1, %s2
  %s5 = scalar_select 0, %s4, %s2
  %6 = sst [smem:[#allocation3]] %s0
  $region1: #{tpu_custom_call.1} parent=0
    #allocation4 [shape = 'u8[8192]{0}', space=vmem, size = 0x2000, scoped, tag = 'output window, operand 0, single buffered']
    #allocation5 [shape = 's32[1]{0}', space=sflag, size = 0x4, scoped, tag = 'scoped memory for tpu_custom_call.1']
    %7 = vsyncpa [#allocation5], 0
    %s8 = sld [smem:[#allocation3]]
    %s9 = smul.u32 %s8, 2654435769
    %s10 = smul.u32 0, 2246822507
    %s11 = sadd.s32 %s9, %s10
    %s12 = sshrl.u32 %s11, 16
    %s13 = sxor.u32 %s11, %s12
    %s14 = smul.u32 %s13, 3266489909
    %v15 = vlaneseq
    %v16 = vshrl.u32 %v15, 7
    %v17 = vadd.s32 %v16, 8
    %v18 = vlaneseq
    %v19 = vand.u32 %v18, 127
    %v20 = vshll.u32 %v16, 7
    %v21 = vshll.u32 %v17, 7
    %v22 = vor.u32 %v20, %v19
    %v23 = vor.u32 %v21, %v19
    %v24 = vstv %s14
    %v25 = vxor.u32 %v22, %v24
    %v26 = vxor.u32 %v23, %v24
    %v27 = vshrl.u32 %v25, 16
    %v28 = vshrl.u32 %v26, 16
    %v29 = vxor.u32 %v25, %v27
    %v30 = vxor.u32 %v26, %v28
    %v31 = vmul.u32 %v29, 2146121005
    %v32 = vmul.u32 %v30, 2146121005
    %v33 = vshrl.u32 %v31, 15
    %v34 = vshrl.u32 %v32, 15
    %v35 = vxor.u32 %v31, %v33
    %v36 = vxor.u32 %v32, %v34
    %v37 = vmul.u32 %v35, 2221713035
    %v38 = vmul.u32 %v36, 2221713035
    %v39 = vshrl.u32 %v37, 9
    %v40 = vshrl.u32 %v38, 9
    %v41 = vor.u32 %v39, 1065353216
    %v42 = vor.u32 %v40, 1065353216
    %v45 = vsub.f32 %v41, 1.0
    %v46 = vsub.f32 %v42, 1.0
    %47 = vst [vmem:[#allocation4] sm:$0xff] %v45
    %48 = vst [vmem:[#allocation4 + $0x8] sm:$0xff] %v46
    // Predicated region
    $region2: #{tpu_custom_call.1} parent=1 // pred_check
      _
    $region3: #{tpu_custom_call.1} parent=1 // pred_check_branch
      %50 = sbr.rel (0) target = $region5
    $region4: #{tpu_custom_call.1} parent=1 // pred_region
      %52 = vsyncadd [#allocation5], 0
      %s53 = sshll.u32 [#allocation4], 4
      %s54 = int_to_ptr.vmem [resolvable:$true] %s53
      %s55 = sshll.u32 %s1, 4
      %s56 = int_to_ptr.hbm [resolvable:$true] %s55
      %61 = dma.vmem_to_hbm [thread:$0]  %s54, 256, %s56, [#allocation5], 128, 128, 8
    $region5: #{tpu_custom_call.1} parent=1 // pred_fallthru
      _
    // Predicated region
    $region6: #{tpu_custom_call.1} parent=1 // pred_check
      _
    $region7: #{tpu_custom_call.1} parent=1 // pred_check_branch
      %63 = sbr.rel (0) target = $region9
    $region8: #{tpu_custom_call.1} parent=1 // pred_region
      %65 = dma.done [#allocation5], 256
    $region9: #{tpu_custom_call.1} parent=1 // pred_fallthru
      _
    %66 = vsyncpa [#allocation5], 1

</llo_original>
